<compile_context>
chip_gen: v5e
topology: v5e:2x2
jax: 0.10.0
libtpu: 0.0.40
codegen_flags: <defaults>
</compile_context>

<pallas_src>
import functools

import jax
import jax.numpy as jnp
from jax import lax
from jax.experimental import pallas as pl
from jax.experimental.pallas import tpu as pltpu

_EPS = 1e-5          # PyTorch InstanceNorm2d default eps
_NEG_SLOPE = 0.2     # LeakyReLU slope


def _unet_down_kernel(x_ref, w_ref, m_ref, o_ref, acc_ref, *,
                      normalize, wp, l_out, total_p):
    """One image per grid step.

    x_ref  : (1, 4*C_in, Qpad) bf16  parity-split padded input, flat spatial
    w_ref  : (4, C_out, 4*C_in) bf16 per-(a,b) 2x2 sub-conv weights (resident)
    m_ref  : (1, L) f32              1.0 on valid columns, 0.0 on pad column
    o_ref  : (1, C_out, L)           output block (lane-dense)
    acc_ref: (C_out, L) f32          conv accumulator scratch
    """
    # 4x4/s2 conv == sum over (a, b) in {0,1}^2 of one MXU matmul against a
    # constant-offset slice of the flat parity-split input (on-chip "im2col").
    for ab in range(4):
        a, b = ab // 2, ab % 2
        off = a * wp + b
        tap = jnp.dot(w_ref[ab], x_ref[0, :, pl.ds(off, l_out)],
                      preferred_element_type=jnp.float32)
        if ab == 0:
            acc_ref[...] = tap
        else:
            acc_ref[...] += tap

    y = acc_ref[...]                                        # (C_out, L) f32
    if normalize:
        # Masked, centered (numerically safe) InstanceNorm over the P valid
        # positions; the per-row padding column is excluded from the stats.
        mask = m_ref[...]                                    # (1, L)
        inv_p = 1.0 / float(total_p)
        mean = jnp.sum(y * mask, axis=1, keepdims=True) * inv_p
        d = y - mean
        var = jnp.sum(d * d * mask, axis=1, keepdims=True) * inv_p
        y = d * lax.rsqrt(var + _EPS)                        # EUP rsqrt
    # LeakyReLU(0.2) + lane-dense store (normalize=False falls straight here).
    o_ref[0, :, :] = jnp.where(y >= 0, y, _NEG_SLOPE * y).astype(o_ref.dtype)


def _round_up(v, m):
    return (v + m - 1) // m * m


@functools.partial(jax.jit, static_argnames=("normalize", "dropout", "out_dtype"))
def unet_down(x, weight, *, normalize=True, dropout=0.0, out_dtype=None):
    """x: [N, C_in, H, W] (NCHW), weight: [C_out, C_in, 4, 4]. Returns NCHW."""
    # TODO(synk): training-mode nn.Dropout (dropout > 0) is not implemented;
    # this matches eval() semantics where nn.Dropout is the identity.
    del dropout
    N, C_in, H, W = x.shape
    C_out = weight.shape[0]
    if H % 2 or W % 2:
        raise ValueError("unet_down expects even H and W (4x4/s2/p1 downsample)")
    H_out, W_out = H // 2, W // 2
    Hp, Wp = H_out + 1, W_out + 1      # parity-split padded spatial extents
    P = H_out * W_out                  # valid output positions per channel
    L = H_out * Wp                     # flat output length (row stride = Wp)
    Q = Hp * Wp                        # flat input length per parity group
    Qpad = _round_up(Q + 1, 128)       # +1: largest tap offset is Wp + 1
    out_dtype = x.dtype if out_dtype is None else jnp.dtype(out_dtype)

    # --- parity-split padded bf16 copy of x (same HBM size as x; NOT im2col) ---
    # x_all[n, (ph*2+pw)*C_in + c, i*Wp + j] = x_pad[n, c, 2i+ph, 2j+pw]
    x_pad = jnp.pad(x, ((0, 0), (0, 0), (1, 1), (1, 1))).astype(jnp.bfloat16)
    xq = x_pad.reshape(N, C_in, Hp, 2, Wp, 2)        # (n, c, i, ph, j, pw)
    xq = xq.transpose(0, 3, 5, 1, 2, 4)              # (n, ph, pw, c, i, j)
    x_all = xq.reshape(N, 4 * C_in, Q)
    x_all = jnp.pad(x_all, ((0, 0), (0, 0), (0, Qpad - Q)))

    # --- weight regrouped per (a, b) 2x2 sub-conv, channel order (ph, pw, c) ---
    # w_stk[a*2+b, o, (ph*2+pw)*C_in + c] = weight[o, c, 2a+ph, 2b+pw]
    w6 = weight.reshape(C_out, C_in, 2, 2, 2, 2)     # (o, c, a, ph, b, pw)
    w_stk = w6.transpose(2, 4, 0, 3, 5, 1).reshape(4, C_out, 4 * C_in)
    w_stk = w_stk.astype(jnp.bfloat16)

    # --- validity mask for the per-row padding column of the flat layout ---
    mask = (jnp.arange(L, dtype=jnp.int32) % Wp < W_out)
    mask = mask.astype(jnp.float32).reshape(1, L)

    # --- generation-aware VMEM budget (v7x: 64 MiB physical) ---
    try:
        vmem_cap = int(pltpu.get_tpu_info().vmem_capacity_bytes)
    except Exception:                                 # conservative fallback
        vmem_cap = 64 * 2 ** 20
    est = (2 * 4 * C_in * Qpad * 2                    # input block (bf16, dbl-buffered)
           + 2 * 4 * C_out * 4 * C_in * 2             # resident weight (bf16)
           + 2 * L * 4                                # mask
           + 2 * C_out * L * out_dtype.itemsize       # output block
           + C_out * L * 4)                           # f32 accumulator
    vmem_limit = int(min(max(est + (8 << 20), 32 << 20),
                         max(vmem_cap - (4 << 20), 16 << 20)))

    kernel = functools.partial(_unet_down_kernel, normalize=normalize,
                               wp=Wp, l_out=L, total_p=P)

    out = pl.pallas_call(
        kernel,
        out_shape=jax.ShapeDtypeStruct((N, C_out, L), out_dtype),
        grid_spec=pltpu.PrefetchScalarGridSpec(
            num_scalar_prefetch=0,
            grid=(N,),
            in_specs=[
                pl.BlockSpec((1, 4 * C_in, Qpad), lambda n: (n, 0, 0)),
                pl.BlockSpec((4, C_out, 4 * C_in), lambda n: (0, 0, 0)),  # resident
                pl.BlockSpec((1, L), lambda n: (0, 0)),                   # resident
            ],
            out_specs=pl.BlockSpec((1, C_out, L), lambda n: (n, 0, 0)),
            scratch_shapes=[pltpu.VMEM((C_out, L), jnp.float32)],
        ),
        compiler_params=pltpu.CompilerParams(
            dimension_semantics=("parallel",),
            vmem_limit_bytes=vmem_limit),
    )(x_all, w_stk, mask)

    # Drop the per-row padding column: (N, C_out, H_out*(W_out+1)) -> NCHW.
    return out.reshape(N, C_out, H_out, Wp)[:, :, :, :W_out]


def _reference(x, weight, *, normalize=True):
    # Matched-precision reference: bf16 conv operands with f32 accumulation,
    # mirroring the kernel's bf16 MXU path; norm / activation in f32.
    y = lax.conv_general_dilated(
        x.astype(jnp.bfloat16), weight.astype(jnp.bfloat16),
        window_strides=(2, 2), padding=((1, 1), (1, 1)),
        dimension_numbers=("NCHW", "OIHW", "NCHW"),
        preferred_element_type=jnp.float32)
    if normalize:
        mean = jnp.mean(y, axis=(2, 3), keepdims=True)
        var = jnp.mean(jnp.square(y - mean), axis=(2, 3), keepdims=True)
        y = (y - mean) / jnp.sqrt(var + _EPS)
    return jnp.where(y >= 0, y, _NEG_SLOPE * y)


if __name__ == "__main__":
    key = jax.random.PRNGKey(0)
    kx, kw = jax.random.split(key)

    N, C_in, H, W = 2, 4, 16, 16
    C_out = 8

    x = jax.random.normal(kx, (N, C_in, H, W), dtype=jnp.float32)
    fan_in = C_in * 4 * 4
    weight = jax.random.normal(kw, (C_out, C_in, 4, 4), dtype=jnp.float32) * (1.0 / fan_in ** 0.5)

    # normalize=True path (Conv -> InstanceNorm -> LeakyReLU)
    out = jax.block_until_ready(unet_down(x, weight, normalize=True, dropout=0.0))
    ref = _reference(x, weight, normalize=True)
    assert out.shape == (N, C_out, H // 2, W // 2), out.shape
    assert jnp.allclose(out, ref, atol=1e-2, rtol=1e-2), "mismatch vs reference (normalize=True)"

    # normalize=False path (Conv -> LeakyReLU), as in the first UNetDown layer
    out2 = jax.block_until_ready(unet_down(x, weight, normalize=False, dropout=0.0))
    ref2 = _reference(x, weight, normalize=False)
    assert out2.shape == (N, C_out, H // 2, W // 2), out2.shape
    assert jnp.allclose(out2, ref2, atol=1e-2, rtol=1e-2), "mismatch vs reference (normalize=False)"

    print("KERNEL_OK")
</pallas_src>

<mosaic_0001>
module attributes {stable_mosaic.version = 11 : i64} {
  func.func @_unet_down_kernel(%arg0: i32, %arg1: memref<1x16x128xbf16, #tpu.memory_space<vmem>>, %arg2: memref<4x8x16xbf16, #tpu.memory_space<vmem>>, %arg3: memref<1x72xf32, #tpu.memory_space<vmem>>, %arg4: memref<1x8x72xf32, #tpu.memory_space<vmem>>, %arg5: memref<8x72xf32, #tpu.memory_space<vmem>>) attributes {dimension_semantics = [#tpu.dimension_semantics<parallel>], iteration_bounds = array<i64: 2>, scalar_prefetch = 0 : i64, scratch_operands = 1 : i64, tpu.core_type = #tpu.core_type<tc>, window_params = [{transform_indices = @transform_0, window_bounds = array<i64: 1, 16, 128>}, {pipeline_mode = #tpu.pipeline_mode<synchronous>, transform_indices = @transform_1, window_bounds = array<i64: 4, 8, 16>}, {pipeline_mode = #tpu.pipeline_mode<synchronous>, transform_indices = @transform_2, window_bounds = array<i64: 1, 72>}, {transform_indices = @transform_3, window_bounds = array<i64: 1, 8, 72>}]} {
    %c0 = arith.constant 0 : index
    %c0_0 = arith.constant 0 : index
    %c0_1 = arith.constant 0 : index
    %0 = vector.load %arg2[%c0, %c0_0, %c0_1] : memref<4x8x16xbf16, #tpu.memory_space<vmem>>, vector<1x8x16xbf16>
    %1 = vector.shape_cast %0 : vector<1x8x16xbf16> to vector<8x16xbf16>
    %c0_2 = arith.constant 0 : index
    %c0_3 = arith.constant 0 : index
    %c0_4 = arith.constant 0 : index
    %2 = vector.load %arg1[%c0_2, %c0_3, %c0_4] : memref<1x16x128xbf16, #tpu.memory_space<vmem>>, vector<1x16x72xbf16>
    %3 = vector.shape_cast %2 : vector<1x16x72xbf16> to vector<16x72xbf16>
    %cst = arith.constant dense<0.000000e+00> : vector<8x72xf32>
    %4 = tpu.matmul %1, %3, %cst {dimension_numbers = #tpu.dot_dimension_numbers<[1], [0], [0], [1], [0, 0, 1, 1], [], []>} : vector<8x16xbf16>, vector<16x72xbf16>, vector<8x72xf32> -> vector<8x72xf32>
    %c0_5 = arith.constant 0 : index
    %c0_6 = arith.constant 0 : index
    %5 = vector.load %arg5[%c0_5, %c0_6] : memref<8x72xf32, #tpu.memory_space<vmem>>, vector<8x72xf32>
    tpu.vector_store %arg5[%c0_5, %c0_6], %4 {strides = array<i32>} : memref<8x72xf32, #tpu.memory_space<vmem>>, vector<8x72xf32>,
    %c1 = arith.constant 1 : index
    %c0_7 = arith.constant 0 : index
    %c0_8 = arith.constant 0 : index
    %6 = vector.load %arg2[%c1, %c0_7, %c0_8] : memref<4x8x16xbf16, #tpu.memory_space<vmem>>, vector<1x8x16xbf16>
    %7 = vector.shape_cast %6 : vector<1x8x16xbf16> to vector<8x16xbf16>
    %c0_9 = arith.constant 0 : index
    %c0_10 = arith.constant 0 : index
    %c1_11 = arith.constant 1 : index
    %8 = vector.load %arg1[%c0_9, %c0_10, %c1_11] : memref<1x16x128xbf16, #tpu.memory_space<vmem>>, vector<1x16x72xbf16>
    %9 = vector.shape_cast %8 : vector<1x16x72xbf16> to vector<16x72xbf16>
    %cst_12 = arith.constant dense<0.000000e+00> : vector<8x72xf32>
    %10 = tpu.matmul %7, %9, %cst_12 {dimension_numbers = #tpu.dot_dimension_numbers<[1], [0], [0], [1], [0, 0, 1, 1], [], []>} : vector<8x16xbf16>, vector<16x72xbf16>, vector<8x72xf32> -> vector<8x72xf32>
    %c0_13 = arith.constant 0 : index
    %c0_14 = arith.constant 0 : index
    %11 = vector.load %arg5[%c0_13, %c0_14] : memref<8x72xf32, #tpu.memory_space<vmem>>, vector<8x72xf32>
    %12 = arith.addf %11, %10 : vector<8x72xf32>
    %c0_15 = arith.constant 0 : index
    %c0_16 = arith.constant 0 : index
    %13 = vector.load %arg5[%c0_15, %c0_16] : memref<8x72xf32, #tpu.memory_space<vmem>>, vector<8x72xf32>
    tpu.vector_store %arg5[%c0_15, %c0_16], %12 {strides = array<i32>} : memref<8x72xf32, #tpu.memory_space<vmem>>, vector<8x72xf32>,
    %c2 = arith.constant 2 : index
    %c0_17 = arith.constant 0 : index
    %c0_18 = arith.constant 0 : index
    %14 = vector.load %arg2[%c2, %c0_17, %c0_18] : memref<4x8x16xbf16, #tpu.memory_space<vmem>>, vector<1x8x16xbf16>
    %15 = vector.shape_cast %14 : vector<1x8x16xbf16> to vector<8x16xbf16>
    %c0_19 = arith.constant 0 : index
    %c0_20 = arith.constant 0 : index
    %c9 = arith.constant 9 : index
    %16 = vector.load %arg1[%c0_19, %c0_20, %c9] : memref<1x16x128xbf16, #tpu.memory_space<vmem>>, vector<1x16x72xbf16>
    %17 = vector.shape_cast %16 : vector<1x16x72xbf16> to vector<16x72xbf16>
    %cst_21 = arith.constant dense<0.000000e+00> : vector<8x72xf32>
    %18 = tpu.matmul %15, %17, %cst_21 {dimension_numbers = #tpu.dot_dimension_numbers<[1], [0], [0], [1], [0, 0, 1, 1], [], []>} : vector<8x16xbf16>, vector<16x72xbf16>, vector<8x72xf32> -> vector<8x72xf32>
    %c0_22 = arith.constant 0 : index
    %c0_23 = arith.constant 0 : index
    %19 = vector.load %arg5[%c0_22, %c0_23] : memref<8x72xf32, #tpu.memory_space<vmem>>, vector<8x72xf32>
    %20 = arith.addf %19, %18 : vector<8x72xf32>
    %c0_24 = arith.constant 0 : index
    %c0_25 = arith.constant 0 : index
    %21 = vector.load %arg5[%c0_24, %c0_25] : memref<8x72xf32, #tpu.memory_space<vmem>>, vector<8x72xf32>
    tpu.vector_store %arg5[%c0_24, %c0_25], %20 {strides = array<i32>} : memref<8x72xf32, #tpu.memory_space<vmem>>, vector<8x72xf32>,
    %c3 = arith.constant 3 : index
    %c0_26 = arith.constant 0 : index
    %c0_27 = arith.constant 0 : index
    %22 = vector.load %arg2[%c3, %c0_26, %c0_27] : memref<4x8x16xbf16, #tpu.memory_space<vmem>>, vector<1x8x16xbf16>
    %23 = vector.shape_cast %22 : vector<1x8x16xbf16> to vector<8x16xbf16>
    %c0_28 = arith.constant 0 : index
    %c0_29 = arith.constant 0 : index
    %c10 = arith.constant 10 : index
    %24 = vector.load %arg1[%c0_28, %c0_29, %c10] : memref<1x16x128xbf16, #tpu.memory_space<vmem>>, vector<1x16x72xbf16>
    %25 = vector.shape_cast %24 : vector<1x16x72xbf16> to vector<16x72xbf16>
    %cst_30 = arith.constant dense<0.000000e+00> : vector<8x72xf32>
    %26 = tpu.matmul %23, %25, %cst_30 {dimension_numbers = #tpu.dot_dimension_numbers<[1], [0], [0], [1], [0, 0, 1, 1], [], []>} : vector<8x16xbf16>, vector<16x72xbf16>, vector<8x72xf32> -> vector<8x72xf32>
    %c0_31 = arith.constant 0 : index
    %c0_32 = arith.constant 0 : index
    %27 = vector.load %arg5[%c0_31, %c0_32] : memref<8x72xf32, #tpu.memory_space<vmem>>, vector<8x72xf32>
    %28 = arith.addf %27, %26 : vector<8x72xf32>
    %c0_33 = arith.constant 0 : index
    %c0_34 = arith.constant 0 : index
    %29 = vector.load %arg5[%c0_33, %c0_34] : memref<8x72xf32, #tpu.memory_space<vmem>>, vector<8x72xf32>
    tpu.vector_store %arg5[%c0_33, %c0_34], %28 {strides = array<i32>} : memref<8x72xf32, #tpu.memory_space<vmem>>, vector<8x72xf32>,
    %c0_35 = arith.constant 0 : index
    %c0_36 = arith.constant 0 : index
    %30 = vector.load %arg5[%c0_35, %c0_36] : memref<8x72xf32, #tpu.memory_space<vmem>>, vector<8x72xf32>
    %c0_37 = arith.constant 0 : index
    %c0_38 = arith.constant 0 : index
    %31 = vector.load %arg3[%c0_37, %c0_38] : memref<1x72xf32, #tpu.memory_space<vmem>>, vector<1x72xf32>
    %32 = vector.broadcast %31 : vector<1x72xf32> to vector<8x72xf32>
    %33 = arith.mulf %30, %32 : vector<8x72xf32>
    %cst_39 = arith.constant dense<0.000000e+00> : vector<8xf32>
    %34 = vector.multi_reduction <add>, %33, %cst_39 [1] : vector<8x72xf32> to vector<8xf32>
    %35 = vector.shape_cast %34 : vector<8xf32> to vector<8x1xf32>
    %cst_40 = arith.constant 1.562500e-02 : f32
    %36 = vector.broadcast %cst_40 : f32 to vector<8x1xf32>
    %37 = arith.mulf %35, %36 : vector<8x1xf32>
    %38 = vector.broadcast %37 : vector<8x1xf32> to vector<8x72xf32>
    %39 = arith.subf %30, %38 : vector<8x72xf32>
    %40 = arith.mulf %39, %39 : vector<8x72xf32>
    %41 = vector.broadcast %31 : vector<1x72xf32> to vector<8x72xf32>
    %42 = arith.mulf %40, %41 : vector<8x72xf32>
    %cst_41 = arith.constant dense<0.000000e+00> : vector<8xf32>
    %43 = vector.multi_reduction <add>, %42, %cst_41 [1] : vector<8x72xf32> to vector<8xf32>
    %44 = vector.shape_cast %43 : vector<8xf32> to vector<8x1xf32>
    %cst_42 = arith.constant 1.562500e-02 : f32
    %45 = vector.broadcast %cst_42 : f32 to vector<8x1xf32>
    %46 = arith.mulf %44, %45 : vector<8x1xf32>
    %cst_43 = arith.constant 9.99999974E-6 : f32
    %47 = vector.broadcast %cst_43 : f32 to vector<8x1xf32>
    %48 = arith.addf %46, %47 : vector<8x1xf32>
    %49 = math.rsqrt %48 : vector<8x1xf32>
    %50 = vector.broadcast %49 : vector<8x1xf32> to vector<8x72xf32>
    %51 = arith.mulf %39, %50 : vector<8x72xf32>
    %cst_44 = arith.constant 0.000000e+00 : f32
    %52 = vector.broadcast %cst_44 : f32 to vector<8x72xf32>
    %53 = arith.cmpf oge, %51, %52 : vector<8x72xf32>
    %cst_45 = arith.constant 2.000000e-01 : f32
    %54 = vector.broadcast %cst_45 : f32 to vector<8x72xf32>
    %55 = arith.mulf %54, %51 : vector<8x72xf32>
    %56 = arith.select %53, %51, %55 : vector<8x72xi1>, vector<8x72xf32>
    %c0_46 = arith.constant 0 : index
    %c0_47 = arith.constant 0 : index
    %c0_48 = arith.constant 0 : index
    %57 = vector.load %arg4[%c0_46, %c0_47, %c0_48] : memref<1x8x72xf32, #tpu.memory_space<vmem>>, vector<1x8x72xf32>
    %58 = vector.shape_cast %57 : vector<1x8x72xf32> to vector<8x72xf32>
    %59 = vector.shape_cast %56 : vector<8x72xf32> to vector<1x8x72xf32>
    tpu.vector_store %arg4[%c0_46, %c0_47, %c0_48], %59 {strides = array<i32>} : memref<1x8x72xf32, #tpu.memory_space<vmem>>, vector<1x8x72xf32>,
    return
  }
  func.func @transform_0(%arg0: i32) -> (i32, i32, i32) {
    %c0_i32 = arith.constant 0 : i32
    %c0_i32_0 = arith.constant 0 : i32
    %c0_i32_1 = arith.constant 0 : i32
    return %arg0, %c0_i32, %c0_i32_0 : i32, i32, i32
  }
  func.func @transform_1(%arg0: i32) -> (i32, i32, i32) {
    %c0_i32 = arith.constant 0 : i32
    %c0_i32_0 = arith.constant 0 : i32
    %c0_i32_1 = arith.constant 0 : i32
    %c0_i32_2 = arith.constant 0 : i32
    return %c0_i32, %c0_i32_0, %c0_i32_1 : i32, i32, i32
  }
  func.func @transform_2(%arg0: i32) -> (i32, i32) {
    %c0_i32 = arith.constant 0 : i32
    %c0_i32_0 = arith.constant 0 : i32
    %c0_i32_1 = arith.constant 0 : i32
    return %c0_i32, %c0_i32_0 : i32, i32
  }
  func.func @transform_3(%arg0: i32) -> (i32, i32, i32) {
    %c0_i32 = arith.constant 0 : i32
    %c0_i32_0 = arith.constant 0 : i32
    %c0_i32_1 = arith.constant 0 : i32
    return %arg0, %c0_i32, %c0_i32_0 : i32, i32, i32
  }
}

</mosaic_0001>

<llo_original>
// kernel: unet_down.1
$region0: #{unet_down.1}
  #allocation0 [shape = 'u32[]', space=smem, size = 0x4, offset = 0x4, fixed_abs, tag = 'smem constant byte address 0x4 - core index']
  #allocation1 [shape = 'u32[72,128]{1,0:T(1,128)}', space=vmem, size = 0x9000, scoped, tag = 'internal scratch']
  #allocation2 [shape = 'f32[8,72]{1,0:T(8,128)}', space=vmem, size = 0x1000, scoped, tag = 'scratch operand']
  %s0 = inlined_call_operand.vmem [shape: bf16[2,16,128], index: 0, kind: input, shape index: {}]
  %s1 = inlined_call_operand.vmem [shape: bf16[4,8,16], index: 1, kind: input, shape index: {}]
  %s2 = inlined_call_operand.vmem [shape: f32[1,72], index: 2, kind: input, shape index: {}]
  %s3 = inlined_call_operand.vmem [shape: f32[2,8,72], index: 3, kind: output, shape index: {}]
  %s4 = sld [smem:[#allocation0]]
  $region45: #{unet_down.1} parent=0
    _
  %s6 = ssub.s32 1, %s4
  %s7 = scalar_select 0, %s6, %s4
  loop: start=0, step=1, limit=4
  $region2: #{unet_down.1} parent=0 // loop_pre_header
    _
  $region3: #{unet_down.1} parent=0 // loop_header
    %s9 = sphi 0, %s13
    %p10 = scmp.ge.s32.totalorder %s9, 4
    %s19 = sphi 0, %s21
    %s22 = sphi 0, %s19
    %s23 = sphi 0, %s22
    %s39 = sphi 0, %s23
    %s43 = sphi 0, %s43
    %s45 = sphi 0, %s43
    %s46 = sphi 0, %s45
    %s60 = sphi 0, %s46
    %s64 = sphi 0, %s64
    %s66 = sphi 0, %s64
    %s67 = sphi 0, %s66
    %s81 = sphi 0, %s67
    %s87 = sphi 0, %s89
    %s90 = sphi 0, %s87
    %s91 = sphi 0, %s90
    %s107 = sphi 0, %s91
  $region4: #{unet_down.1} parent=0 // loop_header_branch
    %12 = sbr.rel (%p10) target = $region8
  $region5: #{unet_down.1} parent=0 // loop_body
    %s14 = ssub.s32 %s9, 1
    %s15 = ssub.s32 %s9, 2
    %s16 = sadd.s32 %s9, 1
    %s17 = ssub.s32 %s9, %s16
    %p18 = scmp.eq.s32.totalorder %s17, 0
    %s20 = sadd.s32 %s19, 1
    %s21 = scalar_select %p18, %s19, %s20
    %p24 = pneg %p18
    %p25 = scmp.eq.s32.totalorder %s9, 1
    %p26 = por %p24, %p25
    %p27 = scmp.ne.s32.totalorder %s19, %s22
    %p28 = scmp.eq.s32.totalorder %s9, 0
    %p29 = por %p27, %p28
    %p30 = scmp.ne.s32.totalorder %s19, %s22
    %p31 = scmp.eq.s32.totalorder %s14, 1
    %p32 = por %p30, %p31
    %p33 = scmp.ne.s32.totalorder %s22, %s23
    %p34 = scmp.eq.s32.totalorder %s14, 0
    %p35 = por %p33, %p34
    %p36 = scmp.ne.s32.totalorder %s22, %s23
    %p37 = scmp.eq.s32.totalorder %s15, 1
    %p38 = por %p36, %p37
    %p40 = scmp.ne.s32.totalorder %s23, %s39
    %p41 = scmp.eq.s32.totalorder %s15, 0
    %p42 = por %p40, %p41
    %s44 = sadd.s32 %s43, 1
    %p47 = scmp.eq.s32.totalorder %s9, 1
    %p48 = scmp.ne.s32.totalorder %s43, %s45
    %p49 = scmp.eq.s32.totalorder %s9, 0
    %p50 = por %p48, %p49
    %p51 = scmp.ne.s32.totalorder %s43, %s45
    %p52 = scmp.eq.s32.totalorder %s14, 1
    %p53 = por %p51, %p52
    %p54 = scmp.ne.s32.totalorder %s45, %s46
    %p55 = scmp.eq.s32.totalorder %s14, 0
    %p56 = por %p54, %p55
    %p57 = scmp.ne.s32.totalorder %s45, %s46
    %p58 = scmp.eq.s32.totalorder %s15, 1
    %p59 = por %p57, %p58
    %p61 = scmp.ne.s32.totalorder %s46, %s60
    %p62 = scmp.eq.s32.totalorder %s15, 0
    %p63 = por %p61, %p62
    %s65 = sadd.s32 %s64, 1
    %p68 = scmp.eq.s32.totalorder %s9, 1
    %p69 = scmp.ne.s32.totalorder %s64, %s66
    %p70 = scmp.eq.s32.totalorder %s9, 0
    %p71 = por %p69, %p70
    %p72 = scmp.ne.s32.totalorder %s64, %s66
    %p73 = scmp.eq.s32.totalorder %s14, 1
    %p74 = por %p72, %p73
    %p75 = scmp.ne.s32.totalorder %s66, %s67
    %p76 = scmp.eq.s32.totalorder %s14, 0
    %p77 = por %p75, %p76
    %p78 = scmp.ne.s32.totalorder %s66, %s67
    %p79 = scmp.eq.s32.totalorder %s15, 1
    %p80 = por %p78, %p79
    %p82 = scmp.ne.s32.totalorder %s67, %s81
    %p83 = scmp.eq.s32.totalorder %s15, 0
    %p84 = por %p82, %p83
    %s85 = ssub.s32 %s9, %s16
    %p86 = scmp.eq.s32.totalorder %s85, 0
    %s88 = sadd.s32 %s87, 1
    %s89 = scalar_select %p86, %s87, %s88
    %p92 = pneg %p86
    %p93 = scmp.eq.s32.totalorder %s9, 1
    %p94 = por %p92, %p93
    %p95 = scmp.ne.s32.totalorder %s87, %s90
    %p96 = scmp.eq.s32.totalorder %s9, 0
    %p97 = por %p95, %p96
    %p98 = scmp.ne.s32.totalorder %s87, %s90
    %p99 = scmp.eq.s32.totalorder %s14, 1
    %p100 = por %p98, %p99
    %p101 = scmp.ne.s32.totalorder %s90, %s91
    %p102 = scmp.eq.s32.totalorder %s14, 0
    %p103 = por %p101, %p102
    %p104 = scmp.ne.s32.totalorder %s90, %s91
    %p105 = scmp.eq.s32.totalorder %s15, 1
    %p106 = por %p104, %p105
    %p108 = scmp.ne.s32.totalorder %s91, %s107
    %p109 = scmp.eq.s32.totalorder %s15, 0
    %p110 = por %p108, %p109
    %p111 = scmp.le.s32.totalorder 1, %s9
    %p112 = scmp.lt.s32.totalorder %s9, 3
    %p113 = pnand %p111, %p112
    %p114 = pneg %p113
    // Predicated region
    $region9: #{unet_down.1} parent=5 // pred_check
      _
    $region10: #{unet_down.1} parent=5 // pred_check_branch
      %116 = sbr.rel (%p113) target = $region12
    $region11: #{unet_down.1} parent=5 // pred_region
      %s117 = ssub.s32 %s9, 1
      // Predicated region
      $region13: #{unet_down.1} parent=11 // pred_check
        %p118 = pneg %p56
      $region14: #{unet_down.1} parent=11 // pred_check_branch
        %120 = sbr.rel (%p118) target = $region16
      $region15: #{unet_down.1} parent=11 // pred_region
        _
      $region16: #{unet_down.1} parent=11 // pred_fallthru
        _
      // Predicated region
      $region17: #{unet_down.1} parent=11 // pred_check
        %p121 = pneg %p77
      $region18: #{unet_down.1} parent=11 // pred_check_branch
        %123 = sbr.rel (%p121) target = $region20
      $region19: #{unet_down.1} parent=11 // pred_region
        _
      $region20: #{unet_down.1} parent=11 // pred_fallthru
        _
    $region12: #{unet_down.1} parent=5 // pred_fallthru
      _
    %p124 = scmp.lt.s32.totalorder %s9, 2
    // Predicated region
    $region21: #{unet_down.1} parent=5 // pred_check
      %p125 = pneg %p124
    $region22: #{unet_down.1} parent=5 // pred_check_branch
      %127 = sbr.rel (%p125) target = $region24
    $region23: #{unet_down.1} parent=5 // pred_region
      // Predicated region
      $region25: #{unet_down.1} parent=23 // pred_check
        %p128 = pneg %p29
      $region26: #{unet_down.1} parent=23 // pred_check_branch
        %130 = sbr.rel (%p128) target = $region28
      $region27: #{unet_down.1} parent=23 // pred_region
        %p131 = scmp.lt.s32.totalorder %s9, 1
        %s132 = scalar_select %p131, %s9, 1
        %s133 = smul.addr %s132, 2
        %s134 = smul.addr %s133, 4
        %s135 = scalar_lea.vmem %s0, %s134
      $region28: #{unet_down.1} parent=23 // pred_fallthru
        _
    $region24: #{unet_down.1} parent=5 // pred_fallthru
      _
    %p136 = scmp.le.s32.totalorder 1, %s9
    %p137 = scmp.lt.s32.totalorder %s9, 3
    %p138 = pnand %p136, %p137
    %p139 = pneg %p138
    // Predicated region
    $region29: #{unet_down.1} parent=5 // pred_check
      _
    $region30: #{unet_down.1} parent=5 // pred_check_branch
      %141 = sbr.rel (%p138) target = $region32
    $region31: #{unet_down.1} parent=5 // pred_region
      %s142 = ssub.s32 %s9, 1
      %p143 = scmp.lt.s32.totalorder %s14, 1
      %s144 = scalar_select %p143, %s14, 1
      %s145 = smul.addr %s144, 2
      %s146 = smul.addr %s145, 4
      %s147 = scalar_lea.vmem %s0, %s146
      %p148 = pneg %p35
      %p149 = pneg %p32
      %p150 = pneg %p56
      %p151 = pneg %p53
      %p152 = pneg %p77
      %p153 = pneg %p74
      %p154 = pneg %p103
      %p155 = pneg %p100
      %p156 = scmp.lt.s32.totalorder %s14, 1
      %s157 = scalar_select %p156, %s14, 1
      %s158 = smul.addr %s157, 8
      %s159 = scalar_lea.vmem %s3, %s158
      %p160 = scmp.lt.s32.totalorder %s14, 1
      %s161 = scalar_select %p160, %s14, 1
      %s162 = smul.addr %s161, 2
      %s163 = smul.addr %s162, 4
      %s164 = scalar_lea.vmem %s0, %s163
      %p165 = scmp.lt.s32.totalorder %s14, 1
      %s166 = scalar_select %p165, %s14, 1
      %s167 = smul.addr %s166, 8
      %s168 = scalar_lea.vmem %s3, %s167
      %v170 = vld [vmem:[%s1] sm:$0xf]
      %v171 = vld [vmem:[%s164] sm:$0xf]
      %v172 = vld [vmem:[%s164 + $0x4] sm:$0xf]
      %v175 = vunpack.c.l.b16 %v171
      %v176 = vunpack.c.l.b16 %v172
      %v177 = vpack.c.b16 %v176, %v175
      %vm179 = vcmask 130048
      %v181 = vsel %vm179, %v170, 0
      %183 = vmatpush.bf16.msra.mxu0 0
      %184 = vmatpush.bf16.msra.mxu0 0
      %185 = vmatpush.bf16.msra.mxu0 0
      %186 = vmatpush.bf16.msra.mxu0 0
      %187 = vmatpush.bf16.msra.mxu0 0
      %188 = vmatpush.bf16.msra.mxu0 0
      %189 = vmatpush.bf16.msra.mxu0 0
      %190 = vmatpush.bf16.msra.mxu0 %v177
      %191 = vmatmul.bf16.gmra.mxu0 %v181
      %v192 = vpop.f32.mrf.mxu0
      %v193 = vadd.f32 0.0, %v192
      %v194 = vpop.f32.mrf.mxu0
      %195 = vdwg.mxu0
      %vm196 = vcmask 588800
      %197 = vst.msk [vmem:[#allocation2] sm:$0xff] %vm196, %v193
      %s198 = scalar_lea.vmem %s1, 4
      %v199 = vld [vmem:[%s198] sm:$0xf]
      %v200 = vld [vmem:[%s164] sm:$0xf]
      %v201 = vld [vmem:[%s164 + $0x4] sm:$0xf]
      %v204 = vunpack.c.l.b16 %v200
      %v205 = vunpack.c.l.b16 %v201
      %v206 = vpack.c.b16 %v205, %v204
      %207 = vrot.lane.b32.xlu0 %v206, 127
      %v208 = vpop.permute.xlu0 %207
      %v211 = vsel %vm179, %v199, 0
      %213 = vmatpush.bf16.msra.mxu0 0
      %214 = vmatpush.bf16.msra.mxu0 0
      %215 = vmatpush.bf16.msra.mxu0 0
      %216 = vmatpush.bf16.msra.mxu0 0
      %217 = vmatpush.bf16.msra.mxu0 0
      %218 = vmatpush.bf16.msra.mxu0 0
      %219 = vmatpush.bf16.msra.mxu0 0
      %220 = vmatpush.bf16.msra.mxu0 %v208
      %221 = vmatmul.bf16.gmra.mxu0 %v211
      %v222 = vpop.f32.mrf.mxu0
      %v223 = vadd.f32 0.0, %v222
      %v224 = vpop.f32.mrf.mxu0
      %225 = vdwg.mxu0
      %v226 = vld [vmem:[#allocation2] sm:$0xff]
      %v227 = vadd.f32 %v226, %v223
      %228 = vst.msk [vmem:[#allocation2] sm:$0xff] %vm196, %v227
      %s229 = scalar_lea.vmem %s1, 8
      %v230 = vld [vmem:[%s229] sm:$0xf]
      %v231 = vld [vmem:[%s164] sm:$0xf]
      %v232 = vld [vmem:[%s164 + $0x4] sm:$0xf]
      %v235 = vunpack.c.l.b16 %v231
      %v236 = vunpack.c.l.b16 %v232
      %v237 = vpack.c.b16 %v236, %v235
      %238 = vrot.lane.b32.xlu0 %v237, 119
      %v239 = vpop.permute.xlu0 %238
      %v242 = vsel %vm179, %v230, 0
      %244 = vmatpush.bf16.msra.mxu0 0
      %245 = vmatpush.bf16.msra.mxu0 0
      %246 = vmatpush.bf16.msra.mxu0 0
      %247 = vmatpush.bf16.msra.mxu0 0
      %248 = vmatpush.bf16.msra.mxu0 0
      %249 = vmatpush.bf16.msra.mxu0 0
      %250 = vmatpush.bf16.msra.mxu0 0
      %251 = vmatpush.bf16.msra.mxu0 %v239
      %252 = vmatmul.bf16.gmra.mxu0 %v242
      %v253 = vpop.f32.mrf.mxu0
      %v254 = vadd.f32 0.0, %v253
      %v255 = vpop.f32.mrf.mxu0
      %256 = vdwg.mxu0
      %v257 = vld [vmem:[#allocation2] sm:$0xff]
      %v258 = vadd.f32 %v257, %v254
      %259 = vst.msk [vmem:[#allocation2] sm:$0xff] %vm196, %v258
      %s260 = scalar_lea.vmem %s1, 12
      %v261 = vld [vmem:[%s260] sm:$0xf]
      %v262 = vld [vmem:[%s164] sm:$0xf]
      %v263 = vld [vmem:[%s164 + $0x4] sm:$0xf]
      %v266 = vunpack.c.l.b16 %v262
      %v267 = vunpack.c.l.b16 %v263
      %v268 = vpack.c.b16 %v267, %v266
      %269 = vrot.lane.b32.xlu0 %v268, 118
      %v270 = vpop.permute.xlu0 %269
      %v273 = vsel %vm179, %v261, 0
      %275 = vmatpush.bf16.msra.mxu0 0
      %276 = vmatpush.bf16.msra.mxu0 0
      %277 = vmatpush.bf16.msra.mxu0 0
      %278 = vmatpush.bf16.msra.mxu0 0
      %279 = vmatpush.bf16.msra.mxu0 0
      %280 = vmatpush.bf16.msra.mxu0 0
      %281 = vmatpush.bf16.msra.mxu0 0
      %282 = vmatpush.bf16.msra.mxu0 %v270
      %283 = vmatmul.bf16.gmra.mxu0 %v273
      %v284 = vpop.f32.mrf.mxu0
      %v285 = vadd.f32 0.0, %v284
      %v286 = vpop.f32.mrf.mxu0
      %287 = vdwg.mxu0
      %v288 = vld [vmem:[#allocation2] sm:$0xff]
      %v289 = vadd.f32 %v288, %v285
      %290 = vst.msk [vmem:[#allocation2] sm:$0xff] %vm196, %v289
      %v291 = vld [vmem:[#allocation2] sm:$0xff]
      %v292 = vld [vmem:[%s2] sm:$0x1]
      %v294 = vperm.slane %v292, 0
      %v296 = vmul.f32 %v291, %v294
      %v297 = vsel %vm196, %v296, 0.0
      %298 = vadd.xlane.f32.xlu0 %v297
      %v299 = vpop.xlane.xlu0 %298
      %v300 = vmul.f32 %v299, 0.015625
      %v301 = vsub.f32 %v291, %v300
      %v302 = vmul.f32 %v301, %v301
      %v303 = vmul.f32 %v302, %v294
      %v304 = vsel %vm196, %v303, 0.0
      %305 = vadd.xlane.f32.xlu0 %v304
      %v306 = vpop.xlane.xlu0 %305
      %v307 = vmul.f32 %v306, 0.015625
      %v308 = vadd.f32 %v307, 1e-05
      %v309 = vrsqrt.pop %v308
      %v310 = vmul.f32 %v309, %v308
      %v311 = vmul.f32 %v310, %v309
      %v312 = vmul.f32 0.5, %v311
      %v313 = vsub.f32 1.5, %v312
      %v314 = vmul.f32 %v309, %v313
      %vm315 = vweird.f32 %v308
      %vm316 = vweird.f32 %v309
      %vm317 = vmor %vm315, %vm316
      %v318 = vsel %vm317, %v309, %v314
      %v319 = vmul.f32 %v301, %v318
      %vm320 = vcmp.ge.f32.partialorder %v319, 0.0
      %v321 = vmul.f32 %v319, 0.2
      %v322 = vsel %vm320, %v319, %v321
      %323 = vst.msk [vmem:[%s168] sm:$0xff] %vm196, %v322
      %p324 = scmp.lt.s32.totalorder %s14, 1
      %s325 = scalar_select %p324, %s14, 1
      %s326 = smul.addr %s325, 8
      %s327 = scalar_lea.vmem %s3, %s326
      // Predicated region
      $region33: #{unet_down.1} parent=31 // pred_check
        %p328 = pneg %p100
      $region34: #{unet_down.1} parent=31 // pred_check_branch
        %330 = sbr.rel (%p328) target = $region36
      $region35: #{unet_down.1} parent=31 // pred_region
        _
      $region36: #{unet_down.1} parent=31 // pred_fallthru
        _
    $region32: #{unet_down.1} parent=5 // pred_fallthru
      _
    %p331 = scmp.le.s32.totalorder 2, %s9
    // Predicated region
    $region37: #{unet_down.1} parent=5 // pred_check
      %p332 = pneg %p331
    $region38: #{unet_down.1} parent=5 // pred_check_branch
      %334 = sbr.rel (%p332) target = $region40
    $region39: #{unet_down.1} parent=5 // pred_region
      %s335 = ssub.s32 %s9, 2
      // Predicated region
      $region41: #{unet_down.1} parent=39 // pred_check
        %p336 = pneg %p106
      $region42: #{unet_down.1} parent=39 // pred_check_branch
        %338 = sbr.rel (%p336) target = $region44
      $region43: #{unet_down.1} parent=39 // pred_region
        %p339 = scmp.lt.s32.totalorder %s15, 1
        %s340 = scalar_select %p339, %s15, 1
        %s341 = smul.addr %s340, 8
        %s342 = scalar_lea.vmem %s3, %s341
      $region44: #{unet_down.1} parent=39 // pred_fallthru
        _
    $region40: #{unet_down.1} parent=5 // pred_fallthru
      _
  $region6: #{unet_down.1} parent=0 // loop_footer
    %s13 = sadd.s32 1, %s9
  $region7: #{unet_down.1} parent=0 // loop_footer_branch
    %8 = sbr.rel target = $region3
  $region8: #{unet_down.1} parent=0 // loop_exit
    _

</llo_original>
